<compile_context>
chip_gen: v7x
topology: tpu7x:2x2x1
jax: 0.10.0
libtpu: 0.0.40
codegen_flags: <defaults>
</compile_context>

<pallas_src>
import math

import jax
import jax.numpy as jnp
from jax.experimental import pallas as pl
from jax.experimental.pallas import tpu as pltpu

_TWO_PI = 2.0 * math.pi
_LANES = 128
_SUBLANES = 8
_CW = _SUBLANES * _LANES   # 1024 columns: one full (8,128) f32 vreg per row-group


def _cdiv(a: int, b: int) -> int:
    return -(-a // b)


def _round_up(x: int, m: int) -> int:
    return _cdiv(x, m) * m


def _vmem_budget():
    """(per-input-tile bytes, scoped-VMEM limit) — generation aware, safe fallback."""
    try:
        vmem = int(pltpu.get_tpu_info().vmem_capacity_bytes)
    except Exception:
        vmem = 64 << 20   # assume the smallest (v7x-sized) VMEM if the query fails
    # 2 inputs x 2 pipeline buffers -> keep pipelined footprint <= vmem/2.
    tile_bytes = max(1 << 20, min(16 << 20, vmem // 8))
    vmem_limit = min(vmem * 3 // 4, 4 * tile_bytes + (16 << 20))
    return tile_bytes, vmem_limit


def _plan(total_elems: int):
    """Choose (rows per tile, tiles per partial, num partials, padded rows, vmem limit)."""
    tile_bytes, vmem_limit = _vmem_budget()
    rows = _cdiv(total_elems, _CW)

    # Two partial sums so the leading 'parallel' grid axis can be sharded across
    # v7x's two TensorCores (just one extra tiny finalize on 1-TC chips).
    num_partials = 2 if rows >= 2 * _SUBLANES else 1
    rows_per_partial = _cdiv(rows, num_partials)

    tb_max = max(_SUBLANES, (tile_bytes // (_CW * 4)) // _SUBLANES * _SUBLANES)
    if num_partials == 1 and rows_per_partial <= tb_max:
        tb, tiles = rows_per_partial, 1            # single block == full padded array
    else:
        tiles = _cdiv(rows_per_partial, tb_max)
        tb = min(tb_max, _round_up(_cdiv(rows_per_partial, tiles), _SUBLANES))
    rows_padded = num_partials * tiles * tb
    return tb, tiles, num_partials, rows_padded, vmem_limit


def _make_kernel(total_elems: int, tiles_per_partial: int):
    inv_two_pi = 1.0 / _TWO_PI
    # Fold the (2*pi)^2 of the squared circular distance into the global mean.
    scale = (_TWO_PI * _TWO_PI) / float(total_elems)

    def kernel(a1_ref, a2_ref, o_ref, acc_ref):
        i = pl.program_id(1)

        @pl.when(i == 0)
        def _init():
            acc_ref[...] = jnp.zeros_like(acc_ref)

        a1 = a1_ref[...].astype(jnp.float32)
        a2 = a2_ref[...].astype(jnp.float32)

        # Circular distance: d = 2*pi * |t - nearest_int(t)|, t = (a1 - a2)/(2*pi).
        # Equivalent to the module's mod-each / abs / min(d, 2*pi - d); the
        # (2*pi)^2 factor lives in `scale` applied at finalize.
        t = (a1 - a2) * jnp.float32(inv_two_pi)
        t = t - jnp.floor(t + jnp.float32(0.5))

        # Lane-parallel partial sums: sublane reduce only -> hot loop stays DMA-bound.
        acc_ref[...] += jnp.sum(t * t, axis=0, keepdims=True)

        @pl.when(i == tiles_per_partial - 1)
        def _finalize():
            partial = jnp.sum(acc_ref[...]) * jnp.float32(scale)
            o_ref[...] = jnp.broadcast_to(partial, (1, _SUBLANES, _LANES))

    return kernel


def angle_vector_mse_loss(angles1: jax.Array, angles2: jax.Array) -> jax.Array:
    assert angles1.shape == angles2.shape and angles1.ndim == 2
    B, N = angles1.shape
    total = B * N

    tb, tiles, num_partials, rows_padded, vmem_limit = _plan(total)
    padded_total = rows_padded * _CW
    pad = padded_total - total

    def _flat(x):
        x = x.reshape(-1)
        if pad:
            # Pad BOTH operands with the same constant -> zero circular diff,
            # so padded elements contribute nothing to the sum.
            x = jnp.pad(x, (0, pad))
        return x.reshape(rows_padded, _CW)

    a1 = _flat(angles1)
    a2 = _flat(angles2)

    kernel = _make_kernel(total, tiles)

    cost = pl.CostEstimate(
        flops=6 * padded_total,
        transcendentals=0,
        bytes_accessed=2 * padded_total * a1.dtype.itemsize
        + num_partials * _SUBLANES * _LANES * 4,
    )

    out = pl.pallas_call(
        kernel,
        out_shape=jax.ShapeDtypeStruct((num_partials, _SUBLANES, _LANES), jnp.float32),
        grid=(num_partials, tiles),
        in_specs=[
            pl.BlockSpec((tb, _CW), lambda c, i: (c * tiles + i, 0)),
            pl.BlockSpec((tb, _CW), lambda c, i: (c * tiles + i, 0)),
        ],
        out_specs=pl.BlockSpec((1, _SUBLANES, _LANES), lambda c, i: (c, 0, 0)),
        scratch_shapes=[pltpu.VMEM((1, _CW), jnp.float32)],
        compiler_params=pltpu.CompilerParams(
            # leading axis: independent partials (shardable across v7x's 2 TCs);
            # trailing axis: serial reduction into the VMEM accumulator.
            dimension_semantics=("parallel", "arbitrary"),
            vmem_limit_bytes=int(vmem_limit),
        ),
        cost_estimate=cost,
    )(a1, a2)

    # Each partial's scaled sum is broadcast across its (8,128) block; sum them.
    return jnp.sum(out[:, 0, 0])


def _reference(angles1, angles2):
    # Matches the PyTorch module exactly (mod each, abs, min, mean-dim1, mean).
    two_pi = 2.0 * jnp.pi
    a1 = jnp.mod(angles1.astype(jnp.float32), two_pi)
    a2 = jnp.mod(angles2.astype(jnp.float32), two_pi)
    d = jnp.abs(a1 - a2)
    d = jnp.minimum(d, two_pi - d)
    return jnp.mean(jnp.mean(jnp.square(d), axis=1))


if __name__ == "__main__":
    key = jax.random.PRNGKey(0)
    k1, k2, k3, k4, k5, k6 = jax.random.split(key, 6)
    cases = [
        ((8, 128), (k1, k2)),    # aligned: no padding, single tile
        ((10, 96), (k3, k4)),    # ragged: exercises the zero-pad tail
        ((33, 600), (k5, k6)),   # larger: exercises the 2-partial 'parallel' path
    ]
    for (B, N), (ka, kb) in cases:
        angles1 = jax.random.uniform(
            ka, (B, N), jnp.float32, minval=-4.0 * jnp.pi, maxval=4.0 * jnp.pi)
        angles2 = jax.random.uniform(
            kb, (B, N), jnp.float32, minval=-4.0 * jnp.pi, maxval=4.0 * jnp.pi)
        loss = angle_vector_mse_loss(angles1, angles2)
        jax.block_until_ready(loss)
        ref = _reference(angles1, angles2)
        assert jnp.allclose(loss, ref, rtol=1e-5, atol=1e-5), ((B, N), loss, ref)

    print("KERNEL_OK")
</pallas_src>

<mosaic_0001>
module attributes {stable_mosaic.version = 11 : i64} {
  func.func @kernel(%arg0: i32, %arg1: i32, %arg2: memref<1x1024xf32, #tpu.memory_space<vmem>>, %arg3: memref<1x1024xf32, #tpu.memory_space<vmem>>, %arg4: memref<1x8x128xf32, #tpu.memory_space<vmem>>, %arg5: memref<1x1024xf32, #tpu.memory_space<vmem>>) attributes {dimension_semantics = [#tpu.dimension_semantics<parallel>, #tpu.dimension_semantics<arbitrary>], iteration_bounds = array<i64: 1, 1>, scalar_prefetch = 0 : i64, scratch_operands = 1 : i64, tpu.core_type = #tpu.core_type<tc>, window_params = [{transform_indices = @transform_0, window_bounds = array<i64: 1, 1024>}, {transform_indices = @transform_1, window_bounds = array<i64: 1, 1024>}, {transform_indices = @transform_2, window_bounds = array<i64: 1, 8, 128>}]} {
    %c0_i32 = arith.constant 0 : i32
    %0 = arith.cmpi eq, %arg1, %c0_i32 : i32
    %1 = arith.extui %0 : i1 to i32
    %c0_i32_0 = arith.constant 0 : i32
    %2 = arith.cmpi ne, %1, %c0_i32_0 : i32
    scf.if %2 {
      %cst_12 = arith.constant 0.000000e+00 : f32
      %21 = vector.broadcast %cst_12 : f32 to vector<1x1024xf32>
      %c0_13 = arith.constant 0 : index
      %c0_14 = arith.constant 0 : index
      %22 = vector.load %arg5[%c0_13, %c0_14] : memref<1x1024xf32, #tpu.memory_space<vmem>>, vector<1x1024xf32>
      tpu.vector_store %arg5[%c0_13, %c0_14], %21 {strides = array<i32>} : memref<1x1024xf32, #tpu.memory_space<vmem>>, vector<1x1024xf32>,
    } else {
    }
    %c0 = arith.constant 0 : index
    %c0_1 = arith.constant 0 : index
    %3 = vector.load %arg2[%c0, %c0_1] : memref<1x1024xf32, #tpu.memory_space<vmem>>, vector<1x1024xf32>
    %c0_2 = arith.constant 0 : index
    %c0_3 = arith.constant 0 : index
    %4 = vector.load %arg3[%c0_2, %c0_3] : memref<1x1024xf32, #tpu.memory_space<vmem>>, vector<1x1024xf32>
    %5 = arith.subf %3, %4 : vector<1x1024xf32>
    %cst = arith.constant 0.159154937 : f32
    %6 = vector.broadcast %cst : f32 to vector<1x1024xf32>
    %7 = arith.mulf %5, %6 : vector<1x1024xf32>
    %cst_4 = arith.constant 5.000000e-01 : f32
    %8 = vector.broadcast %cst_4 : f32 to vector<1x1024xf32>
    %9 = arith.addf %7, %8 : vector<1x1024xf32>
    %10 = math.floor %9 : vector<1x1024xf32>
    %11 = arith.subf %7, %10 : vector<1x1024xf32>
    %c0_5 = arith.constant 0 : index
    %c0_6 = arith.constant 0 : index
    %12 = vector.load %arg5[%c0_5, %c0_6] : memref<1x1024xf32, #tpu.memory_space<vmem>>, vector<1x1024xf32>
    %13 = arith.mulf %11, %11 : vector<1x1024xf32>
    %cst_7 = arith.constant dense<0.000000e+00> : vector<1024xf32>
    %14 = vector.multi_reduction <add>, %13, %cst_7 [0] : vector<1x1024xf32> to vector<1024xf32>
    %15 = vector.shape_cast %14 : vector<1024xf32> to vector<1x1024xf32>
    %16 = arith.addf %12, %15 : vector<1x1024xf32>
    %c0_8 = arith.constant 0 : index
    %c0_9 = arith.constant 0 : index
    %17 = vector.load %arg5[%c0_8, %c0_9] : memref<1x1024xf32, #tpu.memory_space<vmem>>, vector<1x1024xf32>
    tpu.vector_store %arg5[%c0_8, %c0_9], %16 {strides = array<i32>} : memref<1x1024xf32, #tpu.memory_space<vmem>>, vector<1x1024xf32>,
    %c0_i32_10 = arith.constant 0 : i32
    %18 = arith.cmpi eq, %arg1, %c0_i32_10 : i32
    %19 = arith.extui %18 : i1 to i32
    %c0_i32_11 = arith.constant 0 : i32
    %20 = arith.cmpi ne, %19, %c0_i32_11 : i32
    scf.if %20 {
      %c0_12 = arith.constant 0 : index
      %c0_13 = arith.constant 0 : index
      %21 = vector.load %arg5[%c0_12, %c0_13] : memref<1x1024xf32, #tpu.memory_space<vmem>>, vector<1x1024xf32>
      %22 = vector.shape_cast %21 : vector<1x1024xf32> to vector<1x1x1024xf32>
      %cst_14 = arith.constant dense<0.000000e+00> : vector<1xf32>
      %23 = vector.multi_reduction <add>, %22, %cst_14 [1, 2] : vector<1x1x1024xf32> to vector<1xf32>
      %24 = vector.shape_cast %23 : vector<1xf32> to vector<1x1x1xf32>
      %25 = vector.extract %24[0, 0, 0] : f32 from vector<1x1x1xf32>
      %cst_15 = arith.constant 0.0385531411 : f32
      %26 = arith.mulf %25, %cst_15 : f32
      %27 = vector.broadcast %26 : f32 to vector<1x8x128xf32>
      %c0_16 = arith.constant 0 : index
      %c0_17 = arith.constant 0 : index
      %c0_18 = arith.constant 0 : index
      %28 = vector.load %arg4[%c0_16, %c0_17, %c0_18] : memref<1x8x128xf32, #tpu.memory_space<vmem>>, vector<1x8x128xf32>
      tpu.vector_store %arg4[%c0_16, %c0_17, %c0_18], %27 {strides = array<i32>} : memref<1x8x128xf32, #tpu.memory_space<vmem>>, vector<1x8x128xf32>,
    } else {
    }
    return
  }
  func.func @transform_0(%arg0: i32, %arg1: i32) -> (i32, i32) {
    %c1_i32 = arith.constant 1 : i32
    %0 = arith.muli %arg0, %c1_i32 : i32
    %1 = arith.addi %0, %arg1 : i32
    %c0_i32 = arith.constant 0 : i32
    %c0_i32_0 = arith.constant 0 : i32
    return %1, %c0_i32 : i32, i32
  }
  func.func @transform_1(%arg0: i32, %arg1: i32) -> (i32, i32) {
    %c1_i32 = arith.constant 1 : i32
    %0 = arith.muli %arg0, %c1_i32 : i32
    %1 = arith.addi %0, %arg1 : i32
    %c0_i32 = arith.constant 0 : i32
    %c0_i32_0 = arith.constant 0 : i32
    return %1, %c0_i32 : i32, i32
  }
  func.func @transform_2(%arg0: i32, %arg1: i32) -> (i32, i32, i32) {
    %c0_i32 = arith.constant 0 : i32
    %c0_i32_0 = arith.constant 0 : i32
    %c0_i32_1 = arith.constant 0 : i32
    return %arg0, %c0_i32, %c0_i32_0 : i32, i32, i32
  }
}

</mosaic_0001>

<llo_original>
// kernel: tpu_custom_call.1
$region0: #{tpu_custom_call.1}
  #allocation0 [shape = 'u32[]', space=smem, size = 0x4, offset = 0x4, fixed_abs, tag = 'smem constant byte address 0x4 - core index']
  #allocation1 [shape = 'u32[144,128]{1,0:T(1,128)}', space=vmem, size = 0x12000, scoped, tag = 'internal scratch']
  #allocation2 [shape = 'f32[1,1024]{1,0:T(1,128)}', space=vmem, size = 0x1000, scoped, tag = 'scratch operand']
  %s0 = inlined_call_operand.hbm [shape: f32[1,1024], index: 0, kind: input, shape index: {}]
  %s1 = inlined_call_operand.hbm [shape: f32[1,1024], index: 1, kind: input, shape index: {}]
  %s2 = inlined_call_operand.hbm [shape: f32[1,8,128], index: 2, kind: output, shape index: {}]
  %s3 = sld [smem:[#allocation0]]
  $region34: #{tpu_custom_call.1} parent=0
    _
  %s5 = ssub.s32 1, %s3
  %s6 = scalar_select 0, %s5, %s3
  $region1: #{tpu_custom_call.1} parent=0
    #allocation3 [shape = 'u8[4096]{0}', space=vmem, size = 0x1000, scoped, tag = 'input window, operand 0, single buffered']
    #allocation4 [shape = 's32[1]{0}', space=sflag, size = 0x4, scoped, tag = 'scoped memory for tpu_custom_call.1']
    #allocation5 [shape = 's32[1]{0}', space=sflag, size = 0x4, scoped, tag = 'scoped memory for tpu_custom_call.1']
    #allocation6 [shape = 'u8[4096]{0}', space=vmem, size = 0x1000, scoped, tag = 'input window, operand 1, single buffered']
    #allocation7 [shape = 's32[1]{0}', space=sflag, size = 0x4, scoped, tag = 'scoped memory for tpu_custom_call.1']
    #allocation8 [shape = 'u8[4096]{0}', space=vmem, size = 0x1000, scoped, tag = 'output window, operand 0, single buffered']
    %7 = vsyncpa [#allocation4], 0
    %8 = vsyncpa [#allocation7], 0
    %9 = vsyncpa [#allocation5], 0
    // Predicated region
    $region2: #{tpu_custom_call.1} parent=1 // pred_check
      _
    $region3: #{tpu_custom_call.1} parent=1 // pred_check_branch
      %11 = sbr.rel (0) target = $region5
    $region4: #{tpu_custom_call.1} parent=1 // pred_region
      %s12 = sadd.s32 0, 0
      %s14 = ssub.s32 128, 128
      %15 = vsyncadd [#allocation4], %s14
      %s16 = smul.addr %s12, 8
      %s17 = smul.addr %s16, 16
      %s18 = scalar_lea.hbm %s0, %s17
      %s20 = sshll.u32 [#allocation3], 4
      %s21 = int_to_ptr.vmem [resolvable:$true] %s20
      %23 = dma.hbm_to_vmem [thread:$0]  %s18, 128, %s21, [#allocation4]
    $region5: #{tpu_custom_call.1} parent=1 // pred_fallthru
      _
    // Predicated region
    $region6: #{tpu_custom_call.1} parent=1 // pred_check
      _
    $region7: #{tpu_custom_call.1} parent=1 // pred_check_branch
      %25 = sbr.rel (0) target = $region9
    $region8: #{tpu_custom_call.1} parent=1 // pred_region
      %s26 = sadd.s32 0, 0
      %s28 = ssub.s32 128, 128
      %29 = vsyncadd [#allocation7], %s28
      %s30 = smul.addr %s26, 8
      %s31 = smul.addr %s30, 16
      %s32 = scalar_lea.hbm %s1, %s31
      %s34 = sshll.u32 [#allocation6], 4
      %s35 = int_to_ptr.vmem [resolvable:$true] %s34
      %37 = dma.hbm_to_vmem [thread:$0]  %s32, 128, %s35, [#allocation7]
    $region9: #{tpu_custom_call.1} parent=1 // pred_fallthru
      _
    // Predicated region
    $region10: #{tpu_custom_call.1} parent=1 // pred_check
      _
    $region11: #{tpu_custom_call.1} parent=1 // pred_check_branch
      %39 = sbr.rel (0) target = $region13
    $region12: #{tpu_custom_call.1} parent=1 // pred_region
      %40 = dma.done [#allocation4], 128
    $region13: #{tpu_custom_call.1} parent=1 // pred_fallthru
      _
    // Predicated region
    $region14: #{tpu_custom_call.1} parent=1 // pred_check
      _
    $region15: #{tpu_custom_call.1} parent=1 // pred_check_branch
      %42 = sbr.rel (0) target = $region17
    $region16: #{tpu_custom_call.1} parent=1 // pred_region
      %43 = dma.done [#allocation7], 128
    $region17: #{tpu_custom_call.1} parent=1 // pred_fallthru
      _
    %s44 = sadd.s32 0, 0
    %s45 = sadd.s32 0, 0
    %p46 = scmp.eq.s32.totalorder 0, 0
    // Predicated region
    $region18: #{tpu_custom_call.1} parent=1 // pred_check
      %p47 = pneg %p46
    $region19: #{tpu_custom_call.1} parent=1 // pred_check_branch
      %49 = sbr.rel (%p47) target = $region21
    $region20: #{tpu_custom_call.1} parent=1 // pred_region
      %50 = vst [vmem:[#allocation2] sm:$0xff] 0.0
    $region21: #{tpu_custom_call.1} parent=1 // pred_fallthru
      _
    %v51 = vld [vmem:[#allocation3] sm:$0xff]
    %v52 = vld [vmem:[#allocation6] sm:$0xff]
    %v53 = vsub.f32 %v51, %v52
    %v54 = vmul.f32 %v53, 0.15915494
    %v55 = vadd.f32 %v54, 0.5
    %v56 = vfloor.f32 %v55
    %v57 = vsub.f32 %v54, %v56
    %v58 = vld [vmem:[#allocation2] sm:$0xff]
    %v59 = vmul.f32 %v57, %v57
    %v60 = vadd.f32 %v59, 0.0
    %v61 = vadd.f32 %v58, %v60
    %62 = vst [vmem:[#allocation2] sm:$0xff] %v61
    // Predicated region
    $region22: #{tpu_custom_call.1} parent=1 // pred_check
      %p63 = pneg %p46
    $region23: #{tpu_custom_call.1} parent=1 // pred_check_branch
      %65 = sbr.rel (%p63) target = $region25
    $region24: #{tpu_custom_call.1} parent=1 // pred_region
      %v66 = vld [vmem:[#allocation2] sm:$0xff]
      %v68 = vlaneseq
      %v69 = vshrl.u32 %v68, 7
      %v70 = vsub.s32 0, %v69
      %v71 = vrot.slane %v66, %v70
      %v72 = vlaneseq
      %v73 = vshrl.u32 %v72, 7
      %v74 = vsub.s32 1, %v73
      %v75 = vrot.slane %v66, %v74
      %v76 = vlaneseq
      %v77 = vshrl.u32 %v76, 7
      %v78 = vsub.s32 2, %v77
      %v79 = vrot.slane %v66, %v78
      %v80 = vlaneseq
      %v81 = vshrl.u32 %v80, 7
      %v82 = vsub.s32 3, %v81
      %v83 = vrot.slane %v66, %v82
      %v84 = vlaneseq
      %v85 = vshrl.u32 %v84, 7
      %v86 = vsub.s32 4, %v85
      %v87 = vrot.slane %v66, %v86
      %v88 = vlaneseq
      %v89 = vshrl.u32 %v88, 7
      %v90 = vsub.s32 5, %v89
      %v91 = vrot.slane %v66, %v90
      %v92 = vlaneseq
      %v93 = vshrl.u32 %v92, 7
      %v94 = vsub.s32 6, %v93
      %v95 = vrot.slane %v66, %v94
      %v96 = vlaneseq
      %v97 = vshrl.u32 %v96, 7
      %v98 = vsub.s32 7, %v97
      %v99 = vrot.slane %v66, %v98
      %vm108 = vcmask 1040384
      %v109 = vsel %vm108, %v71, 0.0
      %v110 = vsel %vm108, %v75, 0.0
      %v111 = vadd.f32 %v109, %v110
      %v112 = vsel %vm108, %v79, 0.0
      %v113 = vadd.f32 %v111, %v112
      %v114 = vsel %vm108, %v83, 0.0
      %v115 = vadd.f32 %v113, %v114
      %v116 = vsel %vm108, %v87, 0.0
      %v117 = vadd.f32 %v115, %v116
      %v118 = vsel %vm108, %v91, 0.0
      %v119 = vadd.f32 %v117, %v118
      %v120 = vsel %vm108, %v95, 0.0
      %v121 = vadd.f32 %v119, %v120
      %v122 = vsel %vm108, %v99, 0.0
      %v123 = vadd.f32 %v121, %v122
      %124 = vadd.xlane.f32.xlu0 %v123
      %v125 = vpop.xlane.xlu0 %124
      %v126 = vrot.slane %v125, 4
      %v127 = vadd.f32 %v125, %v126
      %v128 = vrot.slane %v127, 2
      %v129 = vadd.f32 %v127, %v128
      %v130 = vrot.slane %v129, 1
      %v131 = vadd.f32 %v129, %v130
      %s132 = vtos %v131
      %s133 = smul.f32 %s132, 0.03855314
      %v134 = vstv %s133
      %135 = vst [vmem:[#allocation8] sm:$0xff] %v134
    $region25: #{tpu_custom_call.1} parent=1 // pred_fallthru
      _
    // Predicated region
    $region26: #{tpu_custom_call.1} parent=1 // pred_check
      _
    $region27: #{tpu_custom_call.1} parent=1 // pred_check_branch
      %137 = sbr.rel (0) target = $region29
    $region28: #{tpu_custom_call.1} parent=1 // pred_region
      %s139 = ssub.s32 128, 128
      %140 = vsyncadd [#allocation5], %s139
      %s142 = sshll.u32 [#allocation8], 4
      %s143 = int_to_ptr.vmem [resolvable:$true] %s142
      %145 = dma.vmem_to_hbm [thread:$0]  %s143, 128, %s2, [#allocation5]
    $region29: #{tpu_custom_call.1} parent=1 // pred_fallthru
      _
    // Predicated region
    $region30: #{tpu_custom_call.1} parent=1 // pred_check
      _
    $region31: #{tpu_custom_call.1} parent=1 // pred_check_branch
      %147 = sbr.rel (0) target = $region33
    $region32: #{tpu_custom_call.1} parent=1 // pred_region
      %148 = dma.done [#allocation5], 128
    $region33: #{tpu_custom_call.1} parent=1 // pred_fallthru
      _
    %149 = vsyncpa [#allocation4], 1
    %150 = vsyncpa [#allocation7], 1
    %151 = vsyncpa [#allocation5], 1

</llo_original>
